<compile_context>
chip_gen: v6e
topology: v6e:2x2x1
jax: 0.10.0
libtpu: 0.0.40
codegen_flags: <defaults>
</compile_context>

<pallas_src>
import jax
import jax.numpy as jnp
from jax.experimental import pallas as pl
from jax.experimental.pallas import tpu as pltpu

_LANE = 128  # samples processed per inner chunk == vreg lane width


def _bssnn_kernel(xT_ref, w1_ref, b1_ref, w2_ref, b2_ref, o_ref):
    # xT_ref: (F, TS)   samples along lanes
    # w1_ref: (2H, F)   fused first-layer weights, hidden units along sublanes
    # b1_ref: (2H, 1)   fused first-layer bias column
    # w2_ref: (2H, 1)   fused (+w2_joint / -w2_marginal) second-layer column
    # b2_ref: (1,)      fused scalar output bias (SMEM)
    # o_ref : (1, TS)   lane-dense sigmoid output
    F, TS = xT_ref.shape
    w1 = w1_ref[...]
    b1 = b1_ref[...]
    w2 = w2_ref[...]
    b2 = b2_ref[0]

    def chunk(j, carry):
        s = pl.multiple_of(j * _LANE, _LANE)
        xc = xT_ref[:, pl.ds(s, _LANE)]                    # (F, 128) lane-dense load
        if F <= 16:
            # degenerate / small-K contraction: unrolled VPU MAC, keep the MXU out
            h = w1[:, 0:1] * xc[0:1, :]                    # (2H, 128)
            for f in range(1, F):
                h = h + w1[:, f:f + 1] * xc[f:f + 1, :]
        else:
            h = jnp.dot(w1, xc, preferred_element_type=jnp.float32)
        h = jnp.maximum(h + b1, 0.0)                       # ReLU (VPU)
        z = jnp.sum(h * w2, axis=0, keepdims=True)         # (1, 128) sublane reduce (XLU)
        o_ref[:, pl.ds(s, _LANE)] = jax.nn.sigmoid(z + b2).astype(o_ref.dtype)
        return carry

    jax.lax.fori_loop(0, TS // _LANE, chunk, 0, unroll=True)


def _round_up(n, m):
    return ((n + m - 1) // m) * m


def bssnn_forward(x, params, *, tile_s=1024):
    """x: (B, input_size) f32. params: per-branch weights/biases. Returns (B, 1) f32."""
    B, F = x.shape
    H2 = 2 * params["w1j"].shape[1]

    # ---- trace-time algebraic fusion of the joint and marginal branches ----
    w1T = jnp.concatenate([params["w1j"], params["w1m"]], axis=1).T          # (2H, F)
    b1c = jnp.concatenate([params["b1j"], params["b1m"]], axis=1).reshape(H2, 1)
    w2c = jnp.concatenate([params["w2j"], -params["w2m"]], axis=0).reshape(H2, 1)
    b2 = (params["b2j"] - params["b2m"]).reshape(1).astype(jnp.float32)      # (1,) scalar

    # ---- samples-in-lanes layout: lane-dense input (F, B) / output (1, B) ----
    xT = x.T if F > 1 else x.reshape(1, B)

    # Tile selection: validated multiples of 128 lanes; force >= 2 grid steps when
    # B >= 256 so v7x's two TensorCores both get work (and the DMA pipeline overlaps).
    tile_s = max(_LANE, _round_up(int(tile_s), _LANE))
    b_lane = _round_up(B, _LANE)
    TS = min(tile_s, b_lane)
    if b_lane // TS < 2 and b_lane >= 2 * _LANE:
        TS = _round_up(pl.cdiv(b_lane, 2), _LANE)
    Bp = _round_up(B, TS)
    grid = (Bp // TS,)

    if Bp != B:
        # zero padding is benign: padded lanes compute sigmoid(sum(relu(b1)*w2)+b2),
        # a finite value that is sliced off below.
        xT = jnp.pad(xT, ((0, 0), (0, Bp - B)))

    out = pl.pallas_call(
        _bssnn_kernel,
        out_shape=jax.ShapeDtypeStruct((1, Bp), jnp.float32),
        grid=grid,
        in_specs=[
            pl.BlockSpec((F, TS), lambda i: (0, i)),             # x^T: tiled over lanes
            pl.BlockSpec((H2, F), lambda i: (0, 0)),             # fused W1^T: VMEM-resident
            pl.BlockSpec((H2, 1), lambda i: (0, 0)),             # fused b1 column
            pl.BlockSpec((H2, 1), lambda i: (0, 0)),             # fused w2 column
            pl.BlockSpec(memory_space=pltpu.MemorySpace.SMEM),   # fused b2: scalar in SMEM
        ],
        out_specs=pl.BlockSpec((1, TS), lambda i: (0, i)),       # lane-dense output row
        compiler_params=pltpu.CompilerParams(
            dimension_semantics=("parallel",)),                  # shard batch across TCs (v7x)
    )(xT, w1T, b1c, w2c, b2)

    return out[0, :B].reshape(B, 1)


def init_params(key, input_size, hidden_size):
    """Deterministic init mirroring PyTorch Linear default (uniform +-1/sqrt(fan_in))."""
    ks = jax.random.split(key, 8)

    def lin(kw, kb, fan_in, fan_out):
        bound = 1.0 / jnp.sqrt(float(fan_in))
        w = jax.random.uniform(kw, (fan_in, fan_out), jnp.float32, -bound, bound)
        b = jax.random.uniform(kb, (1, fan_out), jnp.float32, -bound, bound)
        return w, b

    w1j, b1j = lin(ks[0], ks[1], input_size, hidden_size)
    w2j, b2j = lin(ks[2], ks[3], hidden_size, 1)
    w1m, b1m = lin(ks[4], ks[5], input_size, hidden_size)
    w2m, b2m = lin(ks[6], ks[7], hidden_size, 1)
    return dict(w1j=w1j, b1j=b1j, w2j=w2j, b2j=b2j,
                w1m=w1m, b1m=b1m, w2m=w2m, b2m=b2m)


def reference_forward(x, p):
    """Unfused reference matching the PyTorch module exactly."""
    hj = jnp.maximum(x @ p["w1j"] + p["b1j"], 0.0)
    joint = hj @ p["w2j"] + p["b2j"]
    hm = jnp.maximum(x @ p["w1m"] + p["b1m"], 0.0)
    marginal = hm @ p["w2m"] + p["b2m"]
    return jax.nn.sigmoid(joint - marginal)


if __name__ == "__main__":
    input_size = 1
    hidden_size = 64
    batch = 200          # non-multiple of 128: exercises padding + a 2-step grid

    key = jax.random.PRNGKey(0)
    k_x, k_p = jax.random.split(key)
    x = jax.random.normal(k_x, (batch, input_size), jnp.float32)
    params = init_params(k_p, input_size, hidden_size)

    out = bssnn_forward(x, params)      # grid=(2,) at this batch size (128-lane tiles)
    out = jax.block_until_ready(out)

    ref = reference_forward(x, params)
    assert out.shape == (batch, 1)
    max_err = float(jnp.max(jnp.abs(out - ref)))
    assert jnp.all(jnp.isfinite(out)), "non-finite output"
    assert max_err < 3e-5, max_err

    print("KERNEL_OK")
</pallas_src>

<mosaic_0001>
module attributes {stable_mosaic.version = 11 : i64} {
  func.func @_bssnn_kernel(%arg0: i32, %arg1: memref<1x128xf32, #tpu.memory_space<vmem>>, %arg2: memref<128x1xf32, #tpu.memory_space<vmem>>, %arg3: memref<128x1xf32, #tpu.memory_space<vmem>>, %arg4: memref<128x1xf32, #tpu.memory_space<vmem>>, %arg5: memref<1xf32, #tpu.memory_space<smem>>, %arg6: memref<1x128xf32, #tpu.memory_space<vmem>>) attributes {dimension_semantics = [#tpu.dimension_semantics<parallel>], iteration_bounds = array<i64: 2>, scalar_prefetch = 0 : i64, scratch_operands = 0 : i64, tpu.core_type = #tpu.core_type<tc>, window_params = [{transform_indices = @transform_0, window_bounds = array<i64: 1, 128>}, {pipeline_mode = #tpu.pipeline_mode<synchronous>, transform_indices = @transform_1, window_bounds = array<i64: 128, 1>}, {pipeline_mode = #tpu.pipeline_mode<synchronous>, transform_indices = @transform_2, window_bounds = array<i64: 128, 1>}, {pipeline_mode = #tpu.pipeline_mode<synchronous>, transform_indices = @transform_3, window_bounds = array<i64: 128, 1>}, {transform_indices = @transform_4, window_bounds = array<i64: 1>}, {transform_indices = @transform_5, window_bounds = array<i64: 1, 128>}]} {
    %c0 = arith.constant 0 : index
    %c0_0 = arith.constant 0 : index
    %0 = vector.load %arg2[%c0, %c0_0] : memref<128x1xf32, #tpu.memory_space<vmem>>, vector<128x1xf32>
    %c0_1 = arith.constant 0 : index
    %c0_2 = arith.constant 0 : index
    %1 = vector.load %arg3[%c0_1, %c0_2] : memref<128x1xf32, #tpu.memory_space<vmem>>, vector<128x1xf32>
    %c0_3 = arith.constant 0 : index
    %c0_4 = arith.constant 0 : index
    %2 = vector.load %arg4[%c0_3, %c0_4] : memref<128x1xf32, #tpu.memory_space<vmem>>, vector<128x1xf32>
    %c0_5 = arith.constant 0 : index
    %3 = memref.load %arg5[%c0_5] : memref<1xf32, #tpu.memory_space<smem>>
    %c0_i32 = arith.constant 0 : i32
    %c128_i32 = arith.constant 128 : i32
    %4 = arith.muli %c0_i32, %c128_i32 : i32
    %5 = tpu.assume_multiple %4, 128 : i32
    %c0_6 = arith.constant 0 : index
    %6 = arith.index_cast %5 : i32 to index
    %7 = vector.load %arg1[%c0_6, %6] : memref<1x128xf32, #tpu.memory_space<vmem>>, vector<1x128xf32>
    %8 = vector.broadcast %0 : vector<128x1xf32> to vector<128x128xf32>
    %9 = vector.broadcast %7 : vector<1x128xf32> to vector<128x128xf32>
    %10 = arith.mulf %8, %9 : vector<128x128xf32>
    %11 = vector.broadcast %1 : vector<128x1xf32> to vector<128x128xf32>
    %12 = arith.addf %10, %11 : vector<128x128xf32>
    %cst = arith.constant 0.000000e+00 : f32
    %13 = vector.broadcast %cst : f32 to vector<128x128xf32>
    %14 = arith.maximumf %12, %13 : vector<128x128xf32>
    %15 = vector.broadcast %2 : vector<128x1xf32> to vector<128x128xf32>
    %16 = arith.mulf %14, %15 : vector<128x128xf32>
    %cst_7 = arith.constant dense<0.000000e+00> : vector<128xf32>
    %17 = vector.multi_reduction <add>, %16, %cst_7 [0] : vector<128x128xf32> to vector<128xf32>
    %18 = vector.shape_cast %17 : vector<128xf32> to vector<1x128xf32>
    %19 = vector.broadcast %3 : f32 to vector<1x128xf32>
    %20 = arith.addf %18, %19 : vector<1x128xf32>
    %21 = arith.negf %20 : vector<1x128xf32>
    %22 = math.exp %21 : vector<1x128xf32>
    %cst_8 = arith.constant 1.000000e+00 : f32
    %23 = vector.broadcast %cst_8 : f32 to vector<1x128xf32>
    %24 = arith.addf %23, %22 : vector<1x128xf32>
    %25 = arith.divf %23, %24 : vector<1x128xf32>
    %c0_9 = arith.constant 0 : index
    %26 = arith.index_cast %5 : i32 to index
    %27 = vector.load %arg6[%c0_9, %26] : memref<1x128xf32, #tpu.memory_space<vmem>>, vector<1x128xf32>
    tpu.vector_store %arg6[%c0_9, %26], %25 {strides = array<i32>} : memref<1x128xf32, #tpu.memory_space<vmem>>, vector<1x128xf32>,
    %c1_i32 = arith.constant 1 : i32
    return
  }
  func.func @transform_0(%arg0: i32) -> (i32, i32) {
    %c0_i32 = arith.constant 0 : i32
    %c0_i32_0 = arith.constant 0 : i32
    return %c0_i32, %arg0 : i32, i32
  }
  func.func @transform_1(%arg0: i32) -> (i32, i32) {
    %c0_i32 = arith.constant 0 : i32
    %c0_i32_0 = arith.constant 0 : i32
    %c0_i32_1 = arith.constant 0 : i32
    return %c0_i32, %c0_i32_0 : i32, i32
  }
  func.func @transform_2(%arg0: i32) -> (i32, i32) {
    %c0_i32 = arith.constant 0 : i32
    %c0_i32_0 = arith.constant 0 : i32
    %c0_i32_1 = arith.constant 0 : i32
    return %c0_i32, %c0_i32_0 : i32, i32
  }
  func.func @transform_3(%arg0: i32) -> (i32, i32) {
    %c0_i32 = arith.constant 0 : i32
    %c0_i32_0 = arith.constant 0 : i32
    %c0_i32_1 = arith.constant 0 : i32
    return %c0_i32, %c0_i32_0 : i32, i32
  }
  func.func @transform_4(%arg0: i32) -> i32 {
    %c0_i32 = arith.constant 0 : i32
    %c0_i32_0 = arith.constant 0 : i32
    return %c0_i32 : i32
  }
  func.func @transform_5(%arg0: i32) -> (i32, i32) {
    %c0_i32 = arith.constant 0 : i32
    %c0_i32_0 = arith.constant 0 : i32
    return %c0_i32, %arg0 : i32, i32
  }
}

</mosaic_0001>

<llo_original>
// kernel: tpu_custom_call.1
$region0: #{tpu_custom_call.1}
  #allocation0 [shape = 'u32[]', space=smem, size = 0x4, offset = 0x4, fixed_abs, tag = 'smem constant byte address 0x4 - core index']
  #allocation1 [shape = 'u32[144,128]{1,0:T(1,128)}', space=vmem, size = 0x12000, scoped, tag = 'internal scratch']
  #allocation2 [shape = 'f32[1]{0:T(128)S(6)}', space=smem, size = 0x200, scoped, tag = 'scoped memory for tpu_custom_call.1']
  %s0 = inlined_call_operand.vmem [shape: f32[1,256], index: 0, kind: input, shape index: {}]
  %s1 = inlined_call_operand.vmem [shape: f32[128,1], index: 1, kind: input, shape index: {}]
  %s2 = inlined_call_operand.vmem [shape: f32[128,1], index: 2, kind: input, shape index: {}]
  %s3 = inlined_call_operand.vmem [shape: f32[128,1], index: 3, kind: input, shape index: {}]
  %s4 = inlined_call_operand.<no memory space> [shape: f32[1], index: 4, kind: input, shape index: {}]
  %s5 = inlined_call_operand.hbm [shape: f32[1,256], index: 5, kind: output, shape index: {}]
  %s6 = sld [smem:[#allocation0]]
  $region53: #{tpu_custom_call.1} parent=0
    _
  %s8 = ssub.s32 1, %s6
  %s9 = scalar_select 0, %s8, %s6
  %10 = sst [smem:[#allocation2]] %s4
  $region1: #{tpu_custom_call.1} parent=0
    #allocation3 [shape = 'u8[1024]{0}', space=vmem, size = 0x400, scoped, tag = 'output window, operand 0']
    #allocation4 [shape = 's32[2]{0}', space=sflag, size = 0x8, scoped, tag = 'scoped memory for tpu_custom_call.1']
    %11 = vsyncpa [#allocation4], 0
    %s12 = scalar_lea.sflag [#allocation4], 1
    %13 = vsyncpa %s12, 0
    loop: start=0, step=1, limit=4
    $region2: #{tpu_custom_call.1} parent=1 // loop_pre_header
      _
    $region3: #{tpu_custom_call.1} parent=1 // loop_header
      %s15 = sphi 0, %s19
      %p16 = scmp.ge.s32.totalorder %s15, 4
      %s25 = sphi 0, %s27
      %s28 = sphi 0, %s25
      %s29 = sphi 0, %s28
      %s45 = sphi 0, %s29
      %s49 = sphi 0, %s49
      %s51 = sphi 0, %s49
      %s52 = sphi 0, %s51
      %s66 = sphi 0, %s52
      %s70 = sphi 0, %s70
      %s72 = sphi 0, %s70
      %s73 = sphi 0, %s72
      %s87 = sphi 0, %s73
      %s91 = sphi 0, %s91
      %s93 = sphi 0, %s91
      %s94 = sphi 0, %s93
      %s108 = sphi 0, %s94
      %s112 = sphi 0, %s112
      %s114 = sphi 0, %s112
      %s115 = sphi 0, %s114
      %s129 = sphi 0, %s115
      %s135 = sphi 0, %s137
      %s138 = sphi 0, %s135
      %s139 = sphi 0, %s138
      %s155 = sphi 0, %s139
    $region4: #{tpu_custom_call.1} parent=1 // loop_header_branch
      %18 = sbr.rel (%p16) target = $region8
    $region5: #{tpu_custom_call.1} parent=1 // loop_body
      %s20 = ssub.s32 %s15, 1
      %s21 = ssub.s32 %s15, 2
      %s22 = sadd.s32 %s15, 1
      %s23 = ssub.s32 %s15, %s22
      %p24 = scmp.eq.s32.totalorder %s23, 0
      %s26 = sadd.s32 %s25, 1
      %s27 = scalar_select %p24, %s25, %s26
      %p30 = pneg %p24
      %p31 = scmp.eq.s32.totalorder %s15, 1
      %p32 = por %p30, %p31
      %p33 = scmp.ne.s32.totalorder %s25, %s28
      %p34 = scmp.eq.s32.totalorder %s15, 0
      %p35 = por %p33, %p34
      %p36 = scmp.ne.s32.totalorder %s25, %s28
      %p37 = scmp.eq.s32.totalorder %s20, 1
      %p38 = por %p36, %p37
      %p39 = scmp.ne.s32.totalorder %s28, %s29
      %p40 = scmp.eq.s32.totalorder %s20, 0
      %p41 = por %p39, %p40
      %p42 = scmp.ne.s32.totalorder %s28, %s29
      %p43 = scmp.eq.s32.totalorder %s21, 1
      %p44 = por %p42, %p43
      %p46 = scmp.ne.s32.totalorder %s29, %s45
      %p47 = scmp.eq.s32.totalorder %s21, 0
      %p48 = por %p46, %p47
      %s50 = sadd.s32 %s49, 1
      %p53 = scmp.eq.s32.totalorder %s15, 1
      %p54 = scmp.ne.s32.totalorder %s49, %s51
      %p55 = scmp.eq.s32.totalorder %s15, 0
      %p56 = por %p54, %p55
      %p57 = scmp.ne.s32.totalorder %s49, %s51
      %p58 = scmp.eq.s32.totalorder %s20, 1
      %p59 = por %p57, %p58
      %p60 = scmp.ne.s32.totalorder %s51, %s52
      %p61 = scmp.eq.s32.totalorder %s20, 0
      %p62 = por %p60, %p61
      %p63 = scmp.ne.s32.totalorder %s51, %s52
      %p64 = scmp.eq.s32.totalorder %s21, 1
      %p65 = por %p63, %p64
      %p67 = scmp.ne.s32.totalorder %s52, %s66
      %p68 = scmp.eq.s32.totalorder %s21, 0
      %p69 = por %p67, %p68
      %s71 = sadd.s32 %s70, 1
      %p74 = scmp.eq.s32.totalorder %s15, 1
      %p75 = scmp.ne.s32.totalorder %s70, %s72
      %p76 = scmp.eq.s32.totalorder %s15, 0
      %p77 = por %p75, %p76
      %p78 = scmp.ne.s32.totalorder %s70, %s72
      %p79 = scmp.eq.s32.totalorder %s20, 1
      %p80 = por %p78, %p79
      %p81 = scmp.ne.s32.totalorder %s72, %s73
      %p82 = scmp.eq.s32.totalorder %s20, 0
      %p83 = por %p81, %p82
      %p84 = scmp.ne.s32.totalorder %s72, %s73
      %p85 = scmp.eq.s32.totalorder %s21, 1
      %p86 = por %p84, %p85
      %p88 = scmp.ne.s32.totalorder %s73, %s87
      %p89 = scmp.eq.s32.totalorder %s21, 0
      %p90 = por %p88, %p89
      %s92 = sadd.s32 %s91, 1
      %p95 = scmp.eq.s32.totalorder %s15, 1
      %p96 = scmp.ne.s32.totalorder %s91, %s93
      %p97 = scmp.eq.s32.totalorder %s15, 0
      %p98 = por %p96, %p97
      %p99 = scmp.ne.s32.totalorder %s91, %s93
      %p100 = scmp.eq.s32.totalorder %s20, 1
      %p101 = por %p99, %p100
      %p102 = scmp.ne.s32.totalorder %s93, %s94
      %p103 = scmp.eq.s32.totalorder %s20, 0
      %p104 = por %p102, %p103
      %p105 = scmp.ne.s32.totalorder %s93, %s94
      %p106 = scmp.eq.s32.totalorder %s21, 1
      %p107 = por %p105, %p106
      %p109 = scmp.ne.s32.totalorder %s94, %s108
      %p110 = scmp.eq.s32.totalorder %s21, 0
      %p111 = por %p109, %p110
      %s113 = sadd.s32 %s112, 1
      %p116 = scmp.eq.s32.totalorder %s15, 1
      %p117 = scmp.ne.s32.totalorder %s112, %s114
      %p118 = scmp.eq.s32.totalorder %s15, 0
      %p119 = por %p117, %p118
      %p120 = scmp.ne.s32.totalorder %s112, %s114
      %p121 = scmp.eq.s32.totalorder %s20, 1
      %p122 = por %p120, %p121
      %p123 = scmp.ne.s32.totalorder %s114, %s115
      %p124 = scmp.eq.s32.totalorder %s20, 0
      %p125 = por %p123, %p124
      %p126 = scmp.ne.s32.totalorder %s114, %s115
      %p127 = scmp.eq.s32.totalorder %s21, 1
      %p128 = por %p126, %p127
      %p130 = scmp.ne.s32.totalorder %s115, %s129
      %p131 = scmp.eq.s32.totalorder %s21, 0
      %p132 = por %p130, %p131
      %s133 = ssub.s32 %s15, %s22
      %p134 = scmp.eq.s32.totalorder %s133, 0
      %s136 = sadd.s32 %s135, 1
      %s137 = scalar_select %p134, %s135, %s136
      %p140 = pneg %p134
      %p141 = scmp.eq.s32.totalorder %s15, 1
      %p142 = por %p140, %p141
      %p143 = scmp.ne.s32.totalorder %s135, %s138
      %p144 = scmp.eq.s32.totalorder %s15, 0
      %p145 = por %p143, %p144
      %p146 = scmp.ne.s32.totalorder %s135, %s138
      %p147 = scmp.eq.s32.totalorder %s20, 1
      %p148 = por %p146, %p147
      %p149 = scmp.ne.s32.totalorder %s138, %s139
      %p150 = scmp.eq.s32.totalorder %s20, 0
      %p151 = por %p149, %p150
      %p152 = scmp.ne.s32.totalorder %s138, %s139
      %p153 = scmp.eq.s32.totalorder %s21, 1
      %p154 = por %p152, %p153
      %p156 = scmp.ne.s32.totalorder %s139, %s155
      %p157 = scmp.eq.s32.totalorder %s21, 0
      %p158 = por %p156, %p157
      %p159 = scmp.le.s32.totalorder 1, %s15
      %p160 = scmp.lt.s32.totalorder %s15, 3
      %p161 = pnand %p159, %p160
      %p162 = pneg %p161
      // Predicated region
      $region9: #{tpu_custom_call.1} parent=5 // pred_check
        _
      $region10: #{tpu_custom_call.1} parent=5 // pred_check_branch
        %164 = sbr.rel (%p161) target = $region12
      $region11: #{tpu_custom_call.1} parent=5 // pred_region
        %s165 = ssub.s32 %s15, 1
        // Predicated region
        $region13: #{tpu_custom_call.1} parent=11 // pred_check
          %p166 = pneg %p62
        $region14: #{tpu_custom_call.1} parent=11 // pred_check_branch
          %168 = sbr.rel (%p166) target = $region16
        $region15: #{tpu_custom_call.1} parent=11 // pred_region
          _
        $region16: #{tpu_custom_call.1} parent=11 // pred_fallthru
          _
        // Predicated region
        $region17: #{tpu_custom_call.1} parent=11 // pred_check
          %p169 = pneg %p83
        $region18: #{tpu_custom_call.1} parent=11 // pred_check_branch
          %171 = sbr.rel (%p169) target = $region20
        $region19: #{tpu_custom_call.1} parent=11 // pred_region
          _
        $region20: #{tpu_custom_call.1} parent=11 // pred_fallthru
          _
        // Predicated region
        $region21: #{tpu_custom_call.1} parent=11 // pred_check
          %p172 = pneg %p104
        $region22: #{tpu_custom_call.1} parent=11 // pred_check_branch
          %174 = sbr.rel (%p172) target = $region24
        $region23: #{tpu_custom_call.1} parent=11 // pred_region
          _
        $region24: #{tpu_custom_call.1} parent=11 // pred_fallthru
          _
        // Predicated region
        $region25: #{tpu_custom_call.1} parent=11 // pred_check
          %p175 = pneg %p125
        $region26: #{tpu_custom_call.1} parent=11 // pred_check_branch
          %177 = sbr.rel (%p175) target = $region28
        $region27: #{tpu_custom_call.1} parent=11 // pred_region
          _
        $region28: #{tpu_custom_call.1} parent=11 // pred_fallthru
          _
      $region12: #{tpu_custom_call.1} parent=5 // pred_fallthru
        _
      %p178 = scmp.lt.s32.totalorder %s15, 2
      // Predicated region
      $region29: #{tpu_custom_call.1} parent=5 // pred_check
        %p179 = pneg %p178
      $region30: #{tpu_custom_call.1} parent=5 // pred_check_branch
        %181 = sbr.rel (%p179) target = $region32
      $region31: #{tpu_custom_call.1} parent=5 // pred_region
        // Predicated region
        $region33: #{tpu_custom_call.1} parent=31 // pred_check
          %p182 = pneg %p35
        $region34: #{tpu_custom_call.1} parent=31 // pred_check_branch
          %184 = sbr.rel (%p182) target = $region36
        $region35: #{tpu_custom_call.1} parent=31 // pred_region
          %p185 = scmp.lt.s32.totalorder %s15, 1
          %s186 = scalar_select %p185, %s15, 1
          %s187 = scalar_lea.vmem %s0, %s186
        $region36: #{tpu_custom_call.1} parent=31 // pred_fallthru
          _
      $region32: #{tpu_custom_call.1} parent=5 // pred_fallthru
        _
      %p188 = scmp.le.s32.totalorder 1, %s15
      %p189 = scmp.lt.s32.totalorder %s15, 3
      %p190 = pnand %p188, %p189
      %p191 = pneg %p190
      // Predicated region
      $region37: #{tpu_custom_call.1} parent=5 // pred_check
        _
      $region38: #{tpu_custom_call.1} parent=5 // pred_check_branch
        %193 = sbr.rel (%p190) target = $region40
      $region39: #{tpu_custom_call.1} parent=5 // pred_region
        %s194 = ssub.s32 %s15, 1
        %p195 = scmp.lt.s32.totalorder %s20, 1
        %s196 = scalar_select %p195, %s20, 1
        %s197 = scalar_lea.vmem %s0, %s196
        %p198 = pneg %p41
        %p199 = pneg %p38
        %p200 = pneg %p62
        %p201 = pneg %p59
        %p202 = pneg %p83
        %p203 = pneg %p80
        %p204 = pneg %p104
        %p205 = pneg %p101
        %p206 = pneg %p125
        %p207 = pneg %p122
        %p208 = pneg %p151
        %p209 = pneg %p148
        %s210 = sand.u32 %s138, 1
        %s211 = scalar_lea.sflag [#allocation4], %s210
        %s212 = sand.u32 %s138, 1
        %s213 = scalar_lea.vmem [#allocation3], %s212
        %p214 = scmp.lt.s32.totalorder %s20, 1
        %s215 = scalar_select %p214, %s20, 1
        %s216 = scalar_lea.vmem %s0, %s215
        %v217 = vld [vmem:[%s1] sm:$0xff]
        %v218 = vld [vmem:[%s1 + $0x8] sm:$0xff]
        %v219 = vld [vmem:[%s1 + $0x10] sm:$0xff]
        %v220 = vld [vmem:[%s1 + $0x18] sm:$0xff]
        %v221 = vld [vmem:[%s1 + $0x20] sm:$0xff]
        %v222 = vld [vmem:[%s1 + $0x28] sm:$0xff]
        %v223 = vld [vmem:[%s1 + $0x30] sm:$0xff]
        %v224 = vld [vmem:[%s1 + $0x38] sm:$0xff]
        %v225 = vld [vmem:[%s1 + $0x40] sm:$0xff]
        %v226 = vld [vmem:[%s1 + $0x48] sm:$0xff]
        %v227 = vld [vmem:[%s1 + $0x50] sm:$0xff]
        %v228 = vld [vmem:[%s1 + $0x58] sm:$0xff]
        %v229 = vld [vmem:[%s1 + $0x60] sm:$0xff]
        %v230 = vld [vmem:[%s1 + $0x68] sm:$0xff]
        %v231 = vld [vmem:[%s1 + $0x70] sm:$0xff]
        %v232 = vld [vmem:[%s1 + $0x78] sm:$0xff]
        %v233 = vld [vmem:[%s2] sm:$0xff]
        %v234 = vld [vmem:[%s2 + $0x8] sm:$0xff]
        %v235 = vld [vmem:[%s2 + $0x10] sm:$0xff]
        %v236 = vld [vmem:[%s2 + $0x18] sm:$0xff]
        %v237 = vld [vmem:[%s2 + $0x20] sm:$0xff]
        %v238 = vld [vmem:[%s2 + $0x28] sm:$0xff]
        %v239 = vld [vmem:[%s2 + $0x30] sm:$0xff]
        %v240 = vld [vmem:[%s2 + $0x38] sm:$0xff]
        %v241 = vld [vmem:[%s2 + $0x40] sm:$0xff]
        %v242 = vld [vmem:[%s2 + $0x48] sm:$0xff]
        %v243 = vld [vmem:[%s2 + $0x50] sm:$0xff]
        %v244 = vld [vmem:[%s2 + $0x58] sm:$0xff]
        %v245 = vld [vmem:[%s2 + $0x60] sm:$0xff]
        %v246 = vld [vmem:[%s2 + $0x68] sm:$0xff]
        %v247 = vld [vmem:[%s2 + $0x70] sm:$0xff]
        %v248 = vld [vmem:[%s2 + $0x78] sm:$0xff]
        %v249 = vld [vmem:[%s3] sm:$0xff]
        %v250 = vld [vmem:[%s3 + $0x8] sm:$0xff]
        %v251 = vld [vmem:[%s3 + $0x10] sm:$0xff]
        %v252 = vld [vmem:[%s3 + $0x18] sm:$0xff]
        %v253 = vld [vmem:[%s3 + $0x20] sm:$0xff]
        %v254 = vld [vmem:[%s3 + $0x28] sm:$0xff]
        %v255 = vld [vmem:[%s3 + $0x30] sm:$0xff]
        %v256 = vld [vmem:[%s3 + $0x38] sm:$0xff]
        %v257 = vld [vmem:[%s3 + $0x40] sm:$0xff]
        %v258 = vld [vmem:[%s3 + $0x48] sm:$0xff]
        %v259 = vld [vmem:[%s3 + $0x50] sm:$0xff]
        %v260 = vld [vmem:[%s3 + $0x58] sm:$0xff]
        %v261 = vld [vmem:[%s3 + $0x60] sm:$0xff]
        %v262 = vld [vmem:[%s3 + $0x68] sm:$0xff]
        %v263 = vld [vmem:[%s3 + $0x70] sm:$0xff]
        %v264 = vld [vmem:[%s3 + $0x78] sm:$0xff]
        %s265 = sld [smem:[#allocation2]]
        %v266 = vld [vmem:[%s216] sm:$0x1]
        %268 = vset.pattern.permute.xlu0 0
        %269 = vperm.xlu0 %268, %v217
        %v270 = vpop.permute.xlu0 %269
        %273 = vset.pattern.permute.xlu0 0
        %274 = vperm.xlu0 %273, %v218
        %v275 = vpop.permute.xlu0 %274
        %278 = vset.pattern.permute.xlu0 0
        %279 = vperm.xlu0 %278, %v219
        %v280 = vpop.permute.xlu0 %279
        %283 = vset.pattern.permute.xlu0 0
        %284 = vperm.xlu0 %283, %v220
        %v285 = vpop.permute.xlu0 %284
        %288 = vset.pattern.permute.xlu0 0
        %289 = vperm.xlu0 %288, %v221
        %v290 = vpop.permute.xlu0 %289
        %293 = vset.pattern.permute.xlu0 0
        %294 = vperm.xlu0 %293, %v222
        %v295 = vpop.permute.xlu0 %294
        %298 = vset.pattern.permute.xlu0 0
        %299 = vperm.xlu0 %298, %v223
        %v300 = vpop.permute.xlu0 %299
        %303 = vset.pattern.permute.xlu0 0
        %304 = vperm.xlu0 %303, %v224
        %v305 = vpop.permute.xlu0 %304
        %308 = vset.pattern.permute.xlu0 0
        %309 = vperm.xlu0 %308, %v225
        %v310 = vpop.permute.xlu0 %309
        %313 = vset.pattern.permute.xlu0 0
        %314 = vperm.xlu0 %313, %v226
        %v315 = vpop.permute.xlu0 %314
        %318 = vset.pattern.permute.xlu0 0
        %319 = vperm.xlu0 %318, %v227
        %v320 = vpop.permute.xlu0 %319
        %323 = vset.pattern.permute.xlu0 0
        %324 = vperm.xlu0 %323, %v228
        %v325 = vpop.permute.xlu0 %324
        %328 = vset.pattern.permute.xlu0 0
        %329 = vperm.xlu0 %328, %v229
        %v330 = vpop.permute.xlu0 %329
        %333 = vset.pattern.permute.xlu0 0
        %334 = vperm.xlu0 %333, %v230
        %v335 = vpop.permute.xlu0 %334
        %338 = vset.pattern.permute.xlu0 0
        %339 = vperm.xlu0 %338, %v231
        %v340 = vpop.permute.xlu0 %339
        %343 = vset.pattern.permute.xlu0 0
        %344 = vperm.xlu0 %343, %v232
        %v345 = vpop.permute.xlu0 %344
        %v348 = vlaneseq
        %v349 = vshrl.u32 %v348, 7
        %v350 = vsub.s32 0, %v349
        %v351 = vrot.slane %v266, %v350
        %v353 = vmul.f32 %v270, %v351
        %v354 = vmul.f32 %v275, %v351
        %v355 = vmul.f32 %v280, %v351
        %v356 = vmul.f32 %v285, %v351
        %v357 = vmul.f32 %v290, %v351
        %v358 = vmul.f32 %v295, %v351
        %v359 = vmul.f32 %v300, %v351
        %v360 = vmul.f32 %v305, %v351
        %v361 = vmul.f32 %v310, %v351
        %v362 = vmul.f32 %v315, %v351
        %v363 = vmul.f32 %v320, %v351
        %v364 = vmul.f32 %v325, %v351
        %v365 = vmul.f32 %v330, %v351
        %v366 = vmul.f32 %v335, %v351
        %v367 = vmul.f32 %v340, %v351
        %v368 = vmul.f32 %v345, %v351
        %370 = vset.pattern.permute.xlu0 0
        %371 = vperm.xlu0 %370, %v233
        %v372 = vpop.permute.xlu0 %371
        %375 = vset.pattern.permute.xlu0 0
        %376 = vperm.xlu0 %375, %v234
        %v377 = vpop.permute.xlu0 %376
        %380 = vset.pattern.permute.xlu0 0
        %381 = vperm.xlu0 %380, %v235
        %v382 = vpop.permute.xlu0 %381
        %385 = vset.pattern.permute.xlu0 0
        %386 = vperm.xlu0 %385, %v236
        %v387 = vpop.permute.xlu0 %386
        %390 = vset.pattern.permute.xlu0 0
        %391 = vperm.xlu0 %390, %v237
        %v392 = vpop.permute.xlu0 %391
        %395 = vset.pattern.permute.xlu0 0
        %396 = vperm.xlu0 %395, %v238
        %v397 = vpop.permute.xlu0 %396
        %400 = vset.pattern.permute.xlu0 0
        %401 = vperm.xlu0 %400, %v239
        %v402 = vpop.permute.xlu0 %401
        %405 = vset.pattern.permute.xlu0 0
        %406 = vperm.xlu0 %405, %v240
        %v407 = vpop.permute.xlu0 %406
        %410 = vset.pattern.permute.xlu0 0
        %411 = vperm.xlu0 %410, %v241
        %v412 = vpop.permute.xlu0 %411
        %415 = vset.pattern.permute.xlu0 0
        %416 = vperm.xlu0 %415, %v242
        %v417 = vpop.permute.xlu0 %416
        %420 = vset.pattern.permute.xlu0 0
        %421 = vperm.xlu0 %420, %v243
        %v422 = vpop.permute.xlu0 %421
        %425 = vset.pattern.permute.xlu0 0
        %426 = vperm.xlu0 %425, %v244
        %v427 = vpop.permute.xlu0 %426
        %430 = vset.pattern.permute.xlu0 0
        %431 = vperm.xlu0 %430, %v245
        %v432 = vpop.permute.xlu0 %431
        %435 = vset.pattern.permute.xlu0 0
        %436 = vperm.xlu0 %435, %v246
        %v437 = vpop.permute.xlu0 %436
        %440 = vset.pattern.permute.xlu0 0
        %441 = vperm.xlu0 %440, %v247
        %v442 = vpop.permute.xlu0 %441
        %445 = vset.pattern.permute.xlu0 0
        %446 = vperm.xlu0 %445, %v248
        %v447 = vpop.permute.xlu0 %446
        %v449 = vadd.f32 %v353, %v372
        %v450 = vadd.f32 %v354, %v377
        %v451 = vadd.f32 %v355, %v382
        %v452 = vadd.f32 %v356, %v387
        %v453 = vadd.f32 %v357, %v392
        %v454 = vadd.f32 %v358, %v397
        %v455 = vadd.f32 %v359, %v402
        %v456 = vadd.f32 %v360, %v407
        %v457 = vadd.f32 %v361, %v412
        %v458 = vadd.f32 %v362, %v417
        %v459 = vadd.f32 %v363, %v422
        %v460 = vadd.f32 %v364, %v427
        %v461 = vadd.f32 %v365, %v432
        %v462 = vadd.f32 %v366, %v437
        %v463 = vadd.f32 %v367, %v442
        %v464 = vadd.f32 %v368, %v447
        %v465 = vmax.f32 %v449, 0.0
        %v466 = vmax.f32 %v450, 0.0
        %v467 = vmax.f32 %v451, 0.0
        %v468 = vmax.f32 %v452, 0.0
        %v469 = vmax.f32 %v453, 0.0
        %v470 = vmax.f32 %v454, 0.0
        %v471 = vmax.f32 %v455, 0.0
        %v472 = vmax.f32 %v456, 0.0
        %v473 = vmax.f32 %v457, 0.0
        %v474 = vmax.f32 %v458, 0.0
        %v475 = vmax.f32 %v459, 0.0
        %v476 = vmax.f32 %v460, 0.0
        %v477 = vmax.f32 %v461, 0.0
        %v478 = vmax.f32 %v462, 0.0
        %v479 = vmax.f32 %v463, 0.0
        %v480 = vmax.f32 %v464, 0.0
        %482 = vset.pattern.permute.xlu0 0
        %483 = vperm.xlu0 %482, %v249
        %v484 = vpop.permute.xlu0 %483
        %487 = vset.pattern.permute.xlu0 0
        %488 = vperm.xlu0 %487, %v250
        %v489 = vpop.permute.xlu0 %488
        %492 = vset.pattern.permute.xlu0 0
        %493 = vperm.xlu0 %492, %v251
        %v494 = vpop.permute.xlu0 %493
        %497 = vset.pattern.permute.xlu0 0
        %498 = vperm.xlu0 %497, %v252
        %v499 = vpop.permute.xlu0 %498
        %502 = vset.pattern.permute.xlu0 0
        %503 = vperm.xlu0 %502, %v253
        %v504 = vpop.permute.xlu0 %503
        %507 = vset.pattern.permute.xlu0 0
        %508 = vperm.xlu0 %507, %v254
        %v509 = vpop.permute.xlu0 %508
        %512 = vset.pattern.permute.xlu0 0
        %513 = vperm.xlu0 %512, %v255
        %v514 = vpop.permute.xlu0 %513
        %517 = vset.pattern.permute.xlu0 0
        %518 = vperm.xlu0 %517, %v256
        %v519 = vpop.permute.xlu0 %518
        %522 = vset.pattern.permute.xlu0 0
        %523 = vperm.xlu0 %522, %v257
        %v524 = vpop.permute.xlu0 %523
        %527 = vset.pattern.permute.xlu0 0
        %528 = vperm.xlu0 %527, %v258
        %v529 = vpop.permute.xlu0 %528
        %532 = vset.pattern.permute.xlu0 0
        %533 = vperm.xlu0 %532, %v259
        %v534 = vpop.permute.xlu0 %533
        %537 = vset.pattern.permute.xlu0 0
        %538 = vperm.xlu0 %537, %v260
        %v539 = vpop.permute.xlu0 %538
        %542 = vset.pattern.permute.xlu0 0
        %543 = vperm.xlu0 %542, %v261
        %v544 = vpop.permute.xlu0 %543
        %547 = vset.pattern.permute.xlu0 0
        %548 = vperm.xlu0 %547, %v262
        %v549 = vpop.permute.xlu0 %548
        %552 = vset.pattern.permute.xlu0 0
        %553 = vperm.xlu0 %552, %v263
        %v554 = vpop.permute.xlu0 %553
        %557 = vset.pattern.permute.xlu0 0
        %558 = vperm.xlu0 %557, %v264
        %v559 = vpop.permute.xlu0 %558
        %v561 = vmul.f32 %v465, %v484
        %v562 = vmul.f32 %v466, %v489
        %v563 = vmul.f32 %v467, %v494
        %v564 = vmul.f32 %v468, %v499
        %v565 = vmul.f32 %v469, %v504
        %v566 = vmul.f32 %v470, %v509
        %v567 = vmul.f32 %v471, %v514
        %v568 = vmul.f32 %v472, %v519
        %v569 = vmul.f32 %v473, %v524
        %v570 = vmul.f32 %v474, %v529
        %v571 = vmul.f32 %v475, %v534
        %v572 = vmul.f32 %v476, %v539
        %v573 = vmul.f32 %v477, %v544
        %v574 = vmul.f32 %v478, %v549
        %v575 = vmul.f32 %v479, %v554
        %v576 = vmul.f32 %v480, %v559
        %v577 = vadd.f32 %v561, %v562
        %v578 = vadd.f32 %v577, %v563
        %v579 = vadd.f32 %v578, %v564
        %v580 = vadd.f32 %v579, %v565
        %v581 = vadd.f32 %v580, %v566
        %v582 = vadd.f32 %v581, %v567
        %v583 = vadd.f32 %v582, %v568
        %v584 = vadd.f32 %v583, %v569
        %v585 = vadd.f32 %v584, %v570
        %v586 = vadd.f32 %v585, %v571
        %v587 = vadd.f32 %v586, %v572
        %v588 = vadd.f32 %v587, %v573
        %v589 = vadd.f32 %v588, %v574
        %v590 = vadd.f32 %v589, %v575
        %v591 = vadd.f32 %v590, %v576
        %v592 = vrot.slane %v591, 4
        %v593 = vadd.f32 %v591, %v592
        %v594 = vrot.slane %v593, 2
        %v595 = vadd.f32 %v593, %v594
        %v596 = vrot.slane %v595, 1
        %v597 = vadd.f32 %v595, %v596
        %v598 = vstv %s265
        %v599 = vadd.f32 %v597, %v598
        %v600 = vxor.u32 %v599, 2147483648
        %v601 = vmul.f32 %v600, 1.442695
        %v602 = vpow.pop %v601
        %v603 = vadd.f32 %v602, 1.0
        %v604 = vrcp.pop %v603
        %v605 = vmul.f32 1.0, %v604
        %606 = vst [vmem:[%s213] sm:$0x1] %v605
        %s607 = sand.u32 %s138, 1
        %s608 = scalar_lea.sflag [#allocation4], %s607
        %s609 = sand.u32 %s138, 1
        %s610 = scalar_lea.vmem [#allocation3], %s609
        // Predicated region
        $region41: #{tpu_custom_call.1} parent=39 // pred_check
          %p611 = pneg %p148
        $region42: #{tpu_custom_call.1} parent=39 // pred_check_branch
          %613 = sbr.rel (%p611) target = $region44
        $region43: #{tpu_custom_call.1} parent=39 // pred_region
          %s615 = ssub.s32 16, 16
          %616 = vsyncadd %s608, %s615
          %s617 = smul.addr %s20, 16
          %s618 = scalar_lea.hbm %s5, %s617
          %s620 = sshll.u32 %s610, 4
          %s621 = int_to_ptr.vmem [resolvable:$true] %s620
          %623 = dma.vmem_to_hbm [thread:$0]  %s621, 16, %s618, %s608
        $region44: #{tpu_custom_call.1} parent=39 // pred_fallthru
          _
      $region40: #{tpu_custom_call.1} parent=5 // pred_fallthru
        _
      %p624 = scmp.le.s32.totalorder 2, %s15
      // Predicated region
      $region45: #{tpu_custom_call.1} parent=5 // pred_check
        %p625 = pneg %p624
      $region46: #{tpu_custom_call.1} parent=5 // pred_check_branch
        %627 = sbr.rel (%p625) target = $region48
      $region47: #{tpu_custom_call.1} parent=5 // pred_region
        %s628 = ssub.s32 %s15, 2
        // Predicated region
        $region49: #{tpu_custom_call.1} parent=47 // pred_check
          %p629 = pneg %p154
        $region50: #{tpu_custom_call.1} parent=47 // pred_check_branch
          %631 = sbr.rel (%p629) target = $region52
        $region51: #{tpu_custom_call.1} parent=47 // pred_region
          %s632 = sand.u32 %s139, 1
          %s633 = scalar_lea.sflag [#allocation4], %s632
          %s634 = sand.u32 %s139, 1
          %s635 = scalar_lea.vmem [#allocation3], %s634
          %636 = dma.done %s633, 16
        $region52: #{tpu_custom_call.1} parent=47 // pred_fallthru
          _
      $region48: #{tpu_custom_call.1} parent=5 // pred_fallthru
        _
    $region6: #{tpu_custom_call.1} parent=1 // loop_footer
      %s19 = sadd.s32 1, %s15
    $region7: #{tpu_custom_call.1} parent=1 // loop_footer_branch
      %14 = sbr.rel target = $region3
    $region8: #{tpu_custom_call.1} parent=1 // loop_exit
      _
    %637 = vsyncpa [#allocation4], 1
    %s638 = scalar_lea.sflag [#allocation4], 1
    %639 = vsyncpa %s638, 1

</llo_original>
